<compile_context>
chip_gen: v5e
topology: v5e:2x2
jax: 0.10.0
libtpu: 0.0.40
codegen_flags: <defaults>
</compile_context>

<pallas_src>
import functools

import jax
import jax.numpy as jnp
from jax.experimental import pallas as pl
from jax.experimental.pallas import tpu as pltpu


def autopad(k, p=None, d=1):
    """Pad to 'same' shape outputs (scalar k only)."""
    if d > 1:
        k = d * (k - 1) + 1
    if p is None:
        p = k // 2
    return p


def _matmul_bn_act_kernel(p_ref, w_ref, b_ref, o_ref, *, apply_act):
    """One row tile: (TM, Kc) @ (Kc, C2) + BN shift, then SiLU.

    p_ref: (TM, Kc)  im2col patches (compute dtype)
    w_ref: (Kc, C2)  conv weights with BN scale folded in (compute dtype)
    b_ref: (1,  C2)  BN shift = beta - mean * scale (f32)
    o_ref: (TM, C2)  output rows (exactly C2 lanes -> minimal HBM write bytes)
    """
    acc = jnp.dot(p_ref[...], w_ref[...], preferred_element_type=jnp.float32)
    acc = acc + b_ref[...]
    if apply_act:
        acc = acc * jax.nn.sigmoid(acc)          # SiLU
    o_ref[...] = acc.astype(o_ref.dtype)


def _vmem_limit_bytes():
    """Generation-aware scoped-VMEM limit (review item 5)."""
    try:
        cap = pltpu.get_tpu_info().vmem_capacity_bytes
    except Exception:
        cap = None
    if cap is None:
        return 48 * 1024 * 1024
    if cap >= 128 * 1024 * 1024:        # v5e / v6e: 128 MiB physical
        return 96 * 1024 * 1024
    if cap >= 64 * 1024 * 1024:         # v7x: 64 MiB per TensorCore
        return 48 * 1024 * 1024
    return min(cap // 2, 32 * 1024 * 1024)


def conv_forward(x_nchw, weight_oihw, gamma, beta, running_mean, running_var,
                 *, k=3, s=1, p=None, d=1, g=1, act=True, eps=1e-5,
                 compute_dtype=jnp.bfloat16, out_dtype=None, tm=None):
    """Equivalent of Conv(c1, c2, k, s, p, g, d, act).forward(x) in eval mode."""
    assert g == 1, "groups > 1 not implemented"
    # TODO(synk): grouped conv (g > 1) has no clean single-matmul mapping here.
    N, C1, H, W = x_nchw.shape
    C2 = weight_oihw.shape[0]
    p = autopad(k, p, d)
    if out_dtype is None:
        out_dtype = x_nchw.dtype

    # Output spatial dims (general s / p / d; no 'same'-only assumption).
    Ho = (H + 2 * p - d * (k - 1) - 1) // s + 1
    Wo = (W + 2 * p - d * (k - 1) - 1) // s + 1
    assert Ho > 0 and Wo > 0

    # ---- wrapper glue (plain XLA): layout, BN folding, im2col ----
    # NOTE: the K*K im2col inflates input HBM bytes ~K*K x; with small Cin this
    # stays small next to the output, and it removes all accumulator spill and
    # halo handling from the kernel.
    # TODO(synk): for very large images, fold only kw in the wrapper (Kx) or
    # DMA haloed row slabs in-kernel to avoid the K*K patch inflation.
    x_nhwc = jnp.transpose(x_nchw, (0, 2, 3, 1))
    xp = jnp.pad(x_nhwc, ((0, 0), (p, p), (p, p), (0, 0)))
    cols = []
    for kh in range(k):
        for kw in range(k):
            cols.append(xp[:, kh * d: kh * d + s * (Ho - 1) + 1: s,
                           kw * d: kw * d + s * (Wo - 1) + 1: s, :])
    patches = jnp.concatenate(cols, axis=-1)             # (N, Ho, Wo, K*K*C1)
    Kc = k * k * C1
    patches = patches.reshape(N * Ho * Wo, Kc).astype(compute_dtype)

    scale = gamma / jnp.sqrt(running_var + eps)
    shift = beta - running_mean * scale
    w_hwio = jnp.transpose(weight_oihw, (2, 3, 1, 0))     # (K, K, Cin, Cout)
    # BN scale is folded into the weights BEFORE the compute_dtype cast, so the
    # bf16 path rounds the folded product once (documented; covered by tol).
    w_mat = (w_hwio * scale[None, None, None, :]).reshape(Kc, C2)
    w_mat = w_mat.astype(compute_dtype)
    shift_2d = shift.reshape(1, C2).astype(jnp.float32)

    # ---- row tiling: keep the f32 result tile register-resident ----
    M = N * Ho * Wo
    if tm is None:
        tm = next((c for c in (256, 128, 64, 32, 16, 8) if M % c == 0), 256)
    assert tm % 8 == 0, "row tile must be sublane-aligned"
    Mp = ((M + tm - 1) // tm) * tm
    if Mp != M:
        patches = jnp.pad(patches, ((0, Mp - M), (0, 0)))

    kern = functools.partial(_matmul_bn_act_kernel, apply_act=bool(act))

    out_flat = pl.pallas_call(
        kern,
        out_shape=jax.ShapeDtypeStruct((Mp, C2), out_dtype),
        grid=(Mp // tm,),
        in_specs=[
            pl.BlockSpec((tm, Kc), lambda i: (i, 0)),
            # Weight / shift are tiny (~Kc*C2 elems) and grid-invariant; a
            # Buffered(1) pipeline mode would only shave a few hundred bytes.
            pl.BlockSpec((Kc, C2), lambda i: (0, 0)),
            pl.BlockSpec((1, C2), lambda i: (0, 0)),
        ],
        out_specs=pl.BlockSpec((tm, C2), lambda i: (i, 0)),
        compiler_params=pltpu.CompilerParams(
            dimension_semantics=("parallel",),
            vmem_limit_bytes=_vmem_limit_bytes()),
    )(patches, w_mat, shift_2d)

    out = out_flat[:M].reshape(N, Ho, Wo, C2)
    return jnp.transpose(out, (0, 3, 1, 2))               # back to NCHW


def _reference(x_nchw, weight_oihw, gamma, beta, running_mean, running_var,
               *, k=3, s=1, p=None, d=1, eps=1e-5):
    p = autopad(k, p, d)
    y = jax.lax.conv_general_dilated(
        x_nchw, weight_oihw, window_strides=(s, s),
        padding=[(p, p), (p, p)], rhs_dilation=(d, d),
        dimension_numbers=("NCHW", "OIHW", "NCHW"))
    scale = gamma / jnp.sqrt(running_var + eps)
    shift = beta - running_mean * scale
    y = y * scale[None, :, None, None] + shift[None, :, None, None]
    return y * jax.nn.sigmoid(y)


if __name__ == "__main__":
    key = jax.random.PRNGKey(0)
    k_x, k_w, k_g, k_b, k_m, k_v = jax.random.split(key, 6)

    N, C1, C2, H, W, K = 2, 4, 8, 16, 16, 3

    x = jax.random.normal(k_x, (N, C1, H, W), dtype=jnp.float32)
    # Conv2d(c1, c2, k, bias=False) weight: (c2, c1, k, k).
    weight = jax.random.normal(k_w, (C2, C1, K, K), dtype=jnp.float32) * 0.1
    # BatchNorm2d(c2) params / running stats (eval mode), deterministic.
    gamma = 1.0 + 0.1 * jax.random.normal(k_g, (C2,), dtype=jnp.float32)
    beta = 0.1 * jax.random.normal(k_b, (C2,), dtype=jnp.float32)
    running_mean = 0.1 * jax.random.normal(k_m, (C2,), dtype=jnp.float32)
    running_var = jnp.abs(1.0 + 0.1 * jax.random.normal(k_v, (C2,),
                                                        dtype=jnp.float32))

    ref = _reference(x, weight, gamma, beta, running_mean, running_var, k=K)

    # f32 MXU path, tight tolerance.
    out_f32 = conv_forward(x, weight, gamma, beta, running_mean, running_var,
                           k=K, compute_dtype=jnp.float32)
    out_f32 = jax.block_until_ready(out_f32)
    assert out_f32.shape == (N, C2, H, W)
    assert jnp.allclose(out_f32, ref, atol=2e-3, rtol=2e-3), \
        f"f32 max err {jnp.max(jnp.abs(out_f32 - ref))}"

    # Default fast path (bf16 MXU inputs, f32 accumulation), looser tolerance.
    out_bf16 = conv_forward(x, weight, gamma, beta, running_mean, running_var,
                            k=K, compute_dtype=jnp.bfloat16)
    out_bf16 = jax.block_until_ready(out_bf16)
    assert out_bf16.shape == (N, C2, H, W)
    assert jnp.allclose(out_bf16, ref, atol=5e-2, rtol=5e-2), \
        f"bf16 max err {jnp.max(jnp.abs(out_bf16 - ref))}"

    print("KERNEL_OK")
</pallas_src>

<mosaic_0001>
module attributes {stable_mosaic.version = 11 : i64} {
  func.func @_matmul_bn_act_kernel(%arg0: i32, %arg1: memref<256x36xf32, #tpu.memory_space<vmem>>, %arg2: memref<36x8xf32, #tpu.memory_space<vmem>>, %arg3: memref<1x8xf32, #tpu.memory_space<vmem>>, %arg4: memref<256x8xf32, #tpu.memory_space<vmem>>) attributes {dimension_semantics = [#tpu.dimension_semantics<parallel>], iteration_bounds = array<i64: 2>, scalar_prefetch = 0 : i64, scratch_operands = 0 : i64, tpu.core_type = #tpu.core_type<tc>, window_params = [{transform_indices = @transform_0, window_bounds = array<i64: 256, 36>}, {pipeline_mode = #tpu.pipeline_mode<synchronous>, transform_indices = @transform_1, window_bounds = array<i64: 36, 8>}, {pipeline_mode = #tpu.pipeline_mode<synchronous>, transform_indices = @transform_2, window_bounds = array<i64: 1, 8>}, {transform_indices = @transform_3, window_bounds = array<i64: 256, 8>}]} {
    %c0 = arith.constant 0 : index
    %c0_0 = arith.constant 0 : index
    %0 = vector.load %arg1[%c0, %c0_0] : memref<256x36xf32, #tpu.memory_space<vmem>>, vector<256x36xf32>
    %c0_1 = arith.constant 0 : index
    %c0_2 = arith.constant 0 : index
    %1 = vector.load %arg2[%c0_1, %c0_2] : memref<36x8xf32, #tpu.memory_space<vmem>>, vector<36x8xf32>
    %cst = arith.constant dense<0.000000e+00> : vector<256x8xf32>
    %2 = tpu.matmul %0, %1, %cst {dimension_numbers = #tpu.dot_dimension_numbers<[1], [0], [0], [1], [0, 0, 1, 1], [], []>} : vector<256x36xf32>, vector<36x8xf32>, vector<256x8xf32> -> vector<256x8xf32>
    %c0_3 = arith.constant 0 : index
    %c0_4 = arith.constant 0 : index
    %3 = vector.load %arg3[%c0_3, %c0_4] : memref<1x8xf32, #tpu.memory_space<vmem>>, vector<1x8xf32>
    %4 = vector.broadcast %3 : vector<1x8xf32> to vector<256x8xf32>
    %5 = arith.addf %2, %4 : vector<256x8xf32>
    %6 = arith.negf %5 : vector<256x8xf32>
    %7 = math.exp %6 : vector<256x8xf32>
    %cst_5 = arith.constant 1.000000e+00 : f32
    %8 = vector.broadcast %cst_5 : f32 to vector<256x8xf32>
    %9 = arith.addf %8, %7 : vector<256x8xf32>
    %10 = arith.divf %8, %9 : vector<256x8xf32>
    %11 = arith.mulf %5, %10 : vector<256x8xf32>
    %c0_6 = arith.constant 0 : index
    %c0_7 = arith.constant 0 : index
    %12 = vector.load %arg4[%c0_6, %c0_7] : memref<256x8xf32, #tpu.memory_space<vmem>>, vector<256x8xf32>
    tpu.vector_store %arg4[%c0_6, %c0_7], %11 {strides = array<i32>} : memref<256x8xf32, #tpu.memory_space<vmem>>, vector<256x8xf32>,
    return
  }
  func.func @transform_0(%arg0: i32) -> (i32, i32) {
    %c0_i32 = arith.constant 0 : i32
    %c0_i32_0 = arith.constant 0 : i32
    return %arg0, %c0_i32 : i32, i32
  }
  func.func @transform_1(%arg0: i32) -> (i32, i32) {
    %c0_i32 = arith.constant 0 : i32
    %c0_i32_0 = arith.constant 0 : i32
    %c0_i32_1 = arith.constant 0 : i32
    return %c0_i32, %c0_i32_0 : i32, i32
  }
  func.func @transform_2(%arg0: i32) -> (i32, i32) {
    %c0_i32 = arith.constant 0 : i32
    %c0_i32_0 = arith.constant 0 : i32
    %c0_i32_1 = arith.constant 0 : i32
    return %c0_i32, %c0_i32_0 : i32, i32
  }
  func.func @transform_3(%arg0: i32) -> (i32, i32) {
    %c0_i32 = arith.constant 0 : i32
    %c0_i32_0 = arith.constant 0 : i32
    return %arg0, %c0_i32 : i32, i32
  }
}

</mosaic_0001>

<llo_original>
// kernel: tpu_custom_call.1
$region0: #{tpu_custom_call.1}
  #allocation0 [shape = 'u32[]', space=smem, size = 0x4, offset = 0x4, fixed_abs, tag = 'smem constant byte address 0x4 - core index']
  #allocation1 [shape = 'u32[72,128]{1,0:T(1,128)}', space=vmem, size = 0x9000, scoped, tag = 'internal scratch']
  %s0 = inlined_call_operand.vmem [shape: f32[512,36], index: 0, kind: input, shape index: {}]
  %s1 = inlined_call_operand.vmem [shape: f32[36,8], index: 1, kind: input, shape index: {}]
  %s2 = inlined_call_operand.vmem [shape: f32[1,8], index: 2, kind: input, shape index: {}]
  %s3 = inlined_call_operand.vmem [shape: f32[512,8], index: 3, kind: output, shape index: {}]
  %s4 = sld [smem:[#allocation0]]
  $region45: #{tpu_custom_call.1} parent=0
    _
  %s6 = ssub.s32 1, %s4
  %s7 = scalar_select 0, %s6, %s4
  loop: start=0, step=1, limit=4
  $region2: #{tpu_custom_call.1} parent=0 // loop_pre_header
    _
  $region3: #{tpu_custom_call.1} parent=0 // loop_header
    %s9 = sphi 0, %s13
    %p10 = scmp.ge.s32.totalorder %s9, 4
    %s19 = sphi 0, %s21
    %s22 = sphi 0, %s19
    %s23 = sphi 0, %s22
    %s39 = sphi 0, %s23
    %s43 = sphi 0, %s43
    %s45 = sphi 0, %s43
    %s46 = sphi 0, %s45
    %s60 = sphi 0, %s46
    %s64 = sphi 0, %s64
    %s66 = sphi 0, %s64
    %s67 = sphi 0, %s66
    %s81 = sphi 0, %s67
    %s87 = sphi 0, %s89
    %s90 = sphi 0, %s87
    %s91 = sphi 0, %s90
    %s107 = sphi 0, %s91
  $region4: #{tpu_custom_call.1} parent=0 // loop_header_branch
    %12 = sbr.rel (%p10) target = $region8
  $region5: #{tpu_custom_call.1} parent=0 // loop_body
    %s14 = ssub.s32 %s9, 1
    %s15 = ssub.s32 %s9, 2
    %s16 = sadd.s32 %s9, 1
    %s17 = ssub.s32 %s9, %s16
    %p18 = scmp.eq.s32.totalorder %s17, 0
    %s20 = sadd.s32 %s19, 1
    %s21 = scalar_select %p18, %s19, %s20
    %p24 = pneg %p18
    %p25 = scmp.eq.s32.totalorder %s9, 1
    %p26 = por %p24, %p25
    %p27 = scmp.ne.s32.totalorder %s19, %s22
    %p28 = scmp.eq.s32.totalorder %s9, 0
    %p29 = por %p27, %p28
    %p30 = scmp.ne.s32.totalorder %s19, %s22
    %p31 = scmp.eq.s32.totalorder %s14, 1
    %p32 = por %p30, %p31
    %p33 = scmp.ne.s32.totalorder %s22, %s23
    %p34 = scmp.eq.s32.totalorder %s14, 0
    %p35 = por %p33, %p34
    %p36 = scmp.ne.s32.totalorder %s22, %s23
    %p37 = scmp.eq.s32.totalorder %s15, 1
    %p38 = por %p36, %p37
    %p40 = scmp.ne.s32.totalorder %s23, %s39
    %p41 = scmp.eq.s32.totalorder %s15, 0
    %p42 = por %p40, %p41
    %s44 = sadd.s32 %s43, 1
    %p47 = scmp.eq.s32.totalorder %s9, 1
    %p48 = scmp.ne.s32.totalorder %s43, %s45
    %p49 = scmp.eq.s32.totalorder %s9, 0
    %p50 = por %p48, %p49
    %p51 = scmp.ne.s32.totalorder %s43, %s45
    %p52 = scmp.eq.s32.totalorder %s14, 1
    %p53 = por %p51, %p52
    %p54 = scmp.ne.s32.totalorder %s45, %s46
    %p55 = scmp.eq.s32.totalorder %s14, 0
    %p56 = por %p54, %p55
    %p57 = scmp.ne.s32.totalorder %s45, %s46
    %p58 = scmp.eq.s32.totalorder %s15, 1
    %p59 = por %p57, %p58
    %p61 = scmp.ne.s32.totalorder %s46, %s60
    %p62 = scmp.eq.s32.totalorder %s15, 0
    %p63 = por %p61, %p62
    %s65 = sadd.s32 %s64, 1
    %p68 = scmp.eq.s32.totalorder %s9, 1
    %p69 = scmp.ne.s32.totalorder %s64, %s66
    %p70 = scmp.eq.s32.totalorder %s9, 0
    %p71 = por %p69, %p70
    %p72 = scmp.ne.s32.totalorder %s64, %s66
    %p73 = scmp.eq.s32.totalorder %s14, 1
    %p74 = por %p72, %p73
    %p75 = scmp.ne.s32.totalorder %s66, %s67
    %p76 = scmp.eq.s32.totalorder %s14, 0
    %p77 = por %p75, %p76
    %p78 = scmp.ne.s32.totalorder %s66, %s67
    %p79 = scmp.eq.s32.totalorder %s15, 1
    %p80 = por %p78, %p79
    %p82 = scmp.ne.s32.totalorder %s67, %s81
    %p83 = scmp.eq.s32.totalorder %s15, 0
    %p84 = por %p82, %p83
    %s85 = ssub.s32 %s9, %s16
    %p86 = scmp.eq.s32.totalorder %s85, 0
    %s88 = sadd.s32 %s87, 1
    %s89 = scalar_select %p86, %s87, %s88
    %p92 = pneg %p86
    %p93 = scmp.eq.s32.totalorder %s9, 1
    %p94 = por %p92, %p93
    %p95 = scmp.ne.s32.totalorder %s87, %s90
    %p96 = scmp.eq.s32.totalorder %s9, 0
    %p97 = por %p95, %p96
    %p98 = scmp.ne.s32.totalorder %s87, %s90
    %p99 = scmp.eq.s32.totalorder %s14, 1
    %p100 = por %p98, %p99
    %p101 = scmp.ne.s32.totalorder %s90, %s91
    %p102 = scmp.eq.s32.totalorder %s14, 0
    %p103 = por %p101, %p102
    %p104 = scmp.ne.s32.totalorder %s90, %s91
    %p105 = scmp.eq.s32.totalorder %s15, 1
    %p106 = por %p104, %p105
    %p108 = scmp.ne.s32.totalorder %s91, %s107
    %p109 = scmp.eq.s32.totalorder %s15, 0
    %p110 = por %p108, %p109
    %p111 = scmp.le.s32.totalorder 1, %s9
    %p112 = scmp.lt.s32.totalorder %s9, 3
    %p113 = pnand %p111, %p112
    %p114 = pneg %p113
    // Predicated region
    $region9: #{tpu_custom_call.1} parent=5 // pred_check
      _
    $region10: #{tpu_custom_call.1} parent=5 // pred_check_branch
      %116 = sbr.rel (%p113) target = $region12
    $region11: #{tpu_custom_call.1} parent=5 // pred_region
      %s117 = ssub.s32 %s9, 1
      // Predicated region
      $region13: #{tpu_custom_call.1} parent=11 // pred_check
        %p118 = pneg %p56
      $region14: #{tpu_custom_call.1} parent=11 // pred_check_branch
        %120 = sbr.rel (%p118) target = $region16
      $region15: #{tpu_custom_call.1} parent=11 // pred_region
        _
      $region16: #{tpu_custom_call.1} parent=11 // pred_fallthru
        _
      // Predicated region
      $region17: #{tpu_custom_call.1} parent=11 // pred_check
        %p121 = pneg %p77
      $region18: #{tpu_custom_call.1} parent=11 // pred_check_branch
        %123 = sbr.rel (%p121) target = $region20
      $region19: #{tpu_custom_call.1} parent=11 // pred_region
        _
      $region20: #{tpu_custom_call.1} parent=11 // pred_fallthru
        _
    $region12: #{tpu_custom_call.1} parent=5 // pred_fallthru
      _
    %p124 = scmp.lt.s32.totalorder %s9, 2
    // Predicated region
    $region21: #{tpu_custom_call.1} parent=5 // pred_check
      %p125 = pneg %p124
    $region22: #{tpu_custom_call.1} parent=5 // pred_check_branch
      %127 = sbr.rel (%p125) target = $region24
    $region23: #{tpu_custom_call.1} parent=5 // pred_region
      // Predicated region
      $region25: #{tpu_custom_call.1} parent=23 // pred_check
        %p128 = pneg %p29
      $region26: #{tpu_custom_call.1} parent=23 // pred_check_branch
        %130 = sbr.rel (%p128) target = $region28
      $region27: #{tpu_custom_call.1} parent=23 // pred_region
        %s131 = smul.u32 32, %s9
        %p132 = scmp.lt.s32.totalorder %s131, 63
        %s133 = scalar_select %p132, %s131, 63
        %s134 = smul.addr %s133, 8
        %s135 = scalar_lea.vmem %s0, %s134
        %s136 = smul.u32 32, %s9
      $region28: #{tpu_custom_call.1} parent=23 // pred_fallthru
        _
    $region24: #{tpu_custom_call.1} parent=5 // pred_fallthru
      _
    %p137 = scmp.le.s32.totalorder 1, %s9
    %p138 = scmp.lt.s32.totalorder %s9, 3
    %p139 = pnand %p137, %p138
    %p140 = pneg %p139
    // Predicated region
    $region29: #{tpu_custom_call.1} parent=5 // pred_check
      _
    $region30: #{tpu_custom_call.1} parent=5 // pred_check_branch
      %142 = sbr.rel (%p139) target = $region32
    $region31: #{tpu_custom_call.1} parent=5 // pred_region
      %s143 = ssub.s32 %s9, 1
      %s144 = smul.u32 32, %s14
      %p145 = scmp.lt.s32.totalorder %s144, 63
      %s146 = scalar_select %p145, %s144, 63
      %s147 = smul.addr %s146, 8
      %s148 = scalar_lea.vmem %s0, %s147
      %p149 = pneg %p35
      %p150 = pneg %p32
      %p151 = pneg %p56
      %p152 = pneg %p53
      %p153 = pneg %p77
      %p154 = pneg %p74
      %p155 = pneg %p103
      %p156 = pneg %p100
      %s157 = smul.u32 32, %s14
      %p158 = scmp.lt.s32.totalorder %s157, 63
      %s159 = scalar_select %p158, %s157, 63
      %s160 = smul.addr %s159, 8
      %s161 = scalar_lea.vmem %s3, %s160
      %s162 = smul.u32 32, %s14
      %p163 = scmp.lt.s32.totalorder %s162, 63
      %s164 = scalar_select %p163, %s162, 63
      %s165 = smul.addr %s164, 8
      %s166 = scalar_lea.vmem %s0, %s165
      %s167 = smul.u32 32, %s14
      %s168 = smul.u32 32, %s14
      %p169 = scmp.lt.s32.totalorder %s168, 63
      %s170 = scalar_select %p169, %s168, 63
      %s171 = smul.addr %s170, 8
      %s172 = scalar_lea.vmem %s3, %s171
      %s173 = smul.u32 32, %s14
      %v174 = vld [vmem:[%s166] sm:$0xff]
      %v175 = vld [vmem:[%s166 + $0x8] sm:$0xff]
      %v176 = vld [vmem:[%s166 + $0x10] sm:$0xff]
      %v177 = vld [vmem:[%s166 + $0x18] sm:$0xff]
      %v178 = vld [vmem:[%s166 + $0x20] sm:$0xff]
      %v179 = vld [vmem:[%s166 + $0x28] sm:$0xff]
      %v180 = vld [vmem:[%s166 + $0x30] sm:$0xff]
      %v181 = vld [vmem:[%s166 + $0x38] sm:$0xff]
      %v182 = vld [vmem:[%s166 + $0x40] sm:$0xff]
      %v183 = vld [vmem:[%s166 + $0x48] sm:$0xff]
      %v184 = vld [vmem:[%s166 + $0x50] sm:$0xff]
      %v185 = vld [vmem:[%s166 + $0x58] sm:$0xff]
      %v186 = vld [vmem:[%s166 + $0x60] sm:$0xff]
      %v187 = vld [vmem:[%s166 + $0x68] sm:$0xff]
      %v188 = vld [vmem:[%s166 + $0x70] sm:$0xff]
      %v189 = vld [vmem:[%s166 + $0x78] sm:$0xff]
      %v190 = vld [vmem:[%s166 + $0x80] sm:$0xff]
      %v191 = vld [vmem:[%s166 + $0x88] sm:$0xff]
      %v192 = vld [vmem:[%s166 + $0x90] sm:$0xff]
      %v193 = vld [vmem:[%s166 + $0x98] sm:$0xff]
      %v194 = vld [vmem:[%s166 + $0xa0] sm:$0xff]
      %v195 = vld [vmem:[%s166 + $0xa8] sm:$0xff]
      %v196 = vld [vmem:[%s166 + $0xb0] sm:$0xff]
      %v197 = vld [vmem:[%s166 + $0xb8] sm:$0xff]
      %v198 = vld [vmem:[%s166 + $0xc0] sm:$0xff]
      %v199 = vld [vmem:[%s166 + $0xc8] sm:$0xff]
      %v200 = vld [vmem:[%s166 + $0xd0] sm:$0xff]
      %v201 = vld [vmem:[%s166 + $0xd8] sm:$0xff]
      %v202 = vld [vmem:[%s166 + $0xe0] sm:$0xff]
      %v203 = vld [vmem:[%s166 + $0xe8] sm:$0xff]
      %v204 = vld [vmem:[%s166 + $0xf0] sm:$0xff]
      %v205 = vld [vmem:[%s166 + $0xf8] sm:$0xff]
      %v206 = vld [vmem:[%s1] sm:$0xff]
      %v207 = vld [vmem:[%s1 + $0x8] sm:$0xff]
      %v208 = vld [vmem:[%s1 + $0x10] sm:$0xff]
      %v209 = vld [vmem:[%s1 + $0x18] sm:$0xff]
      %v210 = vld [vmem:[%s1 + $0x20] sm:$0xf]
      %v211 = vld [vmem:[%s2] sm:$0x1]
      %v213 = vperm.slane %v211, 0
      %vm215 = vcmask 293888
      %v217 = vsel %vm215, %v174, 0
      %v220 = vsel %vm215, %v175, 0
      %v223 = vsel %vm215, %v176, 0
      %v226 = vsel %vm215, %v177, 0
      %v229 = vsel %vm215, %v178, 0
      %v232 = vsel %vm215, %v179, 0
      %v235 = vsel %vm215, %v180, 0
      %v238 = vsel %vm215, %v181, 0
      %v241 = vsel %vm215, %v182, 0
      %v244 = vsel %vm215, %v183, 0
      %v247 = vsel %vm215, %v184, 0
      %v250 = vsel %vm215, %v185, 0
      %v253 = vsel %vm215, %v186, 0
      %v256 = vsel %vm215, %v187, 0
      %v259 = vsel %vm215, %v188, 0
      %v262 = vsel %vm215, %v189, 0
      %v265 = vsel %vm215, %v190, 0
      %v268 = vsel %vm215, %v191, 0
      %v271 = vsel %vm215, %v192, 0
      %v274 = vsel %vm215, %v193, 0
      %v277 = vsel %vm215, %v194, 0
      %v280 = vsel %vm215, %v195, 0
      %v283 = vsel %vm215, %v196, 0
      %v286 = vsel %vm215, %v197, 0
      %v289 = vsel %vm215, %v198, 0
      %v292 = vsel %vm215, %v199, 0
      %v295 = vsel %vm215, %v200, 0
      %v298 = vsel %vm215, %v201, 0
      %v301 = vsel %vm215, %v202, 0
      %v304 = vsel %vm215, %v203, 0
      %v307 = vsel %vm215, %v204, 0
      %v310 = vsel %vm215, %v205, 0
      %vm312 = vcmask 1043456
      %v314 = vsel %vm312, %v210, 0
      %316 = vmatpush.msra.mxu0 0.0
      %317 = vmatpush.msra.mxu0 0.0
      %318 = vmatpush.msra.mxu0 0.0
      %319 = vmatpush.msra.mxu0 0.0
      %320 = vmatpush.msra.mxu0 0.0
      %321 = vmatpush.msra.mxu0 0.0
      %322 = vmatpush.msra.mxu0 0.0
      %323 = vmatpush.msra.mxu0 0.0
      %324 = vmatpush.msra.mxu0 0.0
      %325 = vmatpush.msra.mxu0 0.0
      %326 = vmatpush.msra.mxu0 0.0
      %327 = vmatpush.msra.mxu0 %v314
      %328 = vmatpush.msra.mxu0 %v209
      %329 = vmatpush.msra.mxu0 %v208
      %330 = vmatpush.msra.mxu0 %v207
      %331 = vmatpush.msra.mxu0 %v206
      %332 = vmatmul.f32.gmra.mxu0 %v217
      %v333 = vpop.f32.mrf.mxu0
      %v334 = vadd.f32 %v213, %v333
      %335 = vmatmul.f32.gmra.mxu0 %v220
      %v336 = vpop.f32.mrf.mxu0
      %v337 = vadd.f32 %v213, %v336
      %338 = vmatmul.f32.gmra.mxu0 %v223
      %v339 = vpop.f32.mrf.mxu0
      %v340 = vadd.f32 %v213, %v339
      %341 = vmatmul.f32.gmra.mxu0 %v226
      %v342 = vpop.f32.mrf.mxu0
      %v343 = vadd.f32 %v213, %v342
      %344 = vmatmul.f32.gmra.mxu0 %v229
      %v345 = vpop.f32.mrf.mxu0
      %v346 = vadd.f32 %v213, %v345
      %347 = vmatmul.f32.gmra.mxu0 %v232
      %v348 = vpop.f32.mrf.mxu0
      %v349 = vadd.f32 %v213, %v348
      %350 = vmatmul.f32.gmra.mxu0 %v235
      %v351 = vpop.f32.mrf.mxu0
      %v352 = vadd.f32 %v213, %v351
      %353 = vmatmul.f32.gmra.mxu0 %v238
      %v354 = vpop.f32.mrf.mxu0
      %v355 = vadd.f32 %v213, %v354
      %356 = vmatmul.f32.gmra.mxu0 %v241
      %v357 = vpop.f32.mrf.mxu0
      %v358 = vadd.f32 %v213, %v357
      %359 = vmatmul.f32.gmra.mxu0 %v244
      %v360 = vpop.f32.mrf.mxu0
      %v361 = vadd.f32 %v213, %v360
      %362 = vmatmul.f32.gmra.mxu0 %v247
      %v363 = vpop.f32.mrf.mxu0
      %v364 = vadd.f32 %v213, %v363
      %365 = vmatmul.f32.gmra.mxu0 %v250
      %v366 = vpop.f32.mrf.mxu0
      %v367 = vadd.f32 %v213, %v366
      %368 = vmatmul.f32.gmra.mxu0 %v253
      %v369 = vpop.f32.mrf.mxu0
      %v370 = vadd.f32 %v213, %v369
      %371 = vmatmul.f32.gmra.mxu0 %v256
      %v372 = vpop.f32.mrf.mxu0
      %v373 = vadd.f32 %v213, %v372
      %374 = vmatmul.f32.gmra.mxu0 %v259
      %v375 = vpop.f32.mrf.mxu0
      %v376 = vadd.f32 %v213, %v375
      %377 = vmatmul.f32.gmra.mxu0 %v262
      %v378 = vpop.f32.mrf.mxu0
      %v379 = vadd.f32 %v213, %v378
      %380 = vmatmul.f32.gmra.mxu0 %v265
      %v381 = vpop.f32.mrf.mxu0
      %v382 = vadd.f32 %v213, %v381
      %383 = vmatmul.f32.gmra.mxu0 %v268
      %v384 = vpop.f32.mrf.mxu0
      %v385 = vadd.f32 %v213, %v384
      %386 = vmatmul.f32.gmra.mxu0 %v271
      %v387 = vpop.f32.mrf.mxu0
      %v388 = vadd.f32 %v213, %v387
      %389 = vmatmul.f32.gmra.mxu0 %v274
      %v390 = vpop.f32.mrf.mxu0
      %v391 = vadd.f32 %v213, %v390
      %392 = vmatmul.f32.gmra.mxu0 %v277
      %v393 = vpop.f32.mrf.mxu0
      %v394 = vadd.f32 %v213, %v393
      %395 = vmatmul.f32.gmra.mxu0 %v280
      %v396 = vpop.f32.mrf.mxu0
      %v397 = vadd.f32 %v213, %v396
      %398 = vmatmul.f32.gmra.mxu0 %v283
      %v399 = vpop.f32.mrf.mxu0
      %v400 = vadd.f32 %v213, %v399
      %401 = vmatmul.f32.gmra.mxu0 %v286
      %v402 = vpop.f32.mrf.mxu0
      %v403 = vadd.f32 %v213, %v402
      %404 = vmatmul.f32.gmra.mxu0 %v289
      %v405 = vpop.f32.mrf.mxu0
      %v406 = vadd.f32 %v213, %v405
      %407 = vmatmul.f32.gmra.mxu0 %v292
      %v408 = vpop.f32.mrf.mxu0
      %v409 = vadd.f32 %v213, %v408
      %410 = vmatmul.f32.gmra.mxu0 %v295
      %v411 = vpop.f32.mrf.mxu0
      %v412 = vadd.f32 %v213, %v411
      %413 = vmatmul.f32.gmra.mxu0 %v298
      %v414 = vpop.f32.mrf.mxu0
      %v415 = vadd.f32 %v213, %v414
      %416 = vmatmul.f32.gmra.mxu0 %v301
      %v417 = vpop.f32.mrf.mxu0
      %v418 = vadd.f32 %v213, %v417
      %419 = vmatmul.f32.gmra.mxu0 %v304
      %v420 = vpop.f32.mrf.mxu0
      %v421 = vadd.f32 %v213, %v420
      %422 = vmatmul.f32.gmra.mxu0 %v307
      %v423 = vpop.f32.mrf.mxu0
      %v424 = vadd.f32 %v213, %v423
      %425 = vmatmul.f32.gmra.mxu0 %v310
      %v426 = vpop.f32.mrf.mxu0
      %v427 = vadd.f32 %v213, %v426
      %428 = vdwg.mxu0
      %v429 = vxor.u32 %v334, 2147483648
      %v430 = vxor.u32 %v337, 2147483648
      %v431 = vxor.u32 %v340, 2147483648
      %v432 = vxor.u32 %v343, 2147483648
      %v433 = vxor.u32 %v346, 2147483648
      %v434 = vxor.u32 %v349, 2147483648
      %v435 = vxor.u32 %v352, 2147483648
      %v436 = vxor.u32 %v355, 2147483648
      %v437 = vxor.u32 %v358, 2147483648
      %v438 = vxor.u32 %v361, 2147483648
      %v439 = vxor.u32 %v364, 2147483648
      %v440 = vxor.u32 %v367, 2147483648
      %v441 = vxor.u32 %v370, 2147483648
      %v442 = vxor.u32 %v373, 2147483648
      %v443 = vxor.u32 %v376, 2147483648
      %v444 = vxor.u32 %v379, 2147483648
      %v445 = vxor.u32 %v382, 2147483648
      %v446 = vxor.u32 %v385, 2147483648
      %v447 = vxor.u32 %v388, 2147483648
      %v448 = vxor.u32 %v391, 2147483648
      %v449 = vxor.u32 %v394, 2147483648
      %v450 = vxor.u32 %v397, 2147483648
      %v451 = vxor.u32 %v400, 2147483648
      %v452 = vxor.u32 %v403, 2147483648
      %v453 = vxor.u32 %v406, 2147483648
      %v454 = vxor.u32 %v409, 2147483648
      %v455 = vxor.u32 %v412, 2147483648
      %v456 = vxor.u32 %v415, 2147483648
      %v457 = vxor.u32 %v418, 2147483648
      %v458 = vxor.u32 %v421, 2147483648
      %v459 = vxor.u32 %v424, 2147483648
      %v460 = vxor.u32 %v427, 2147483648
      %v461 = vmul.f32 %v429, 1.442695
      %v462 = vpow.pop %v461
      %v463 = vmul.f32 %v430, 1.442695
      %v464 = vpow.pop %v463
      %v465 = vmul.f32 %v431, 1.442695
      %v466 = vpow.pop %v465
      %v467 = vmul.f32 %v432, 1.442695
      %v468 = vpow.pop %v467
      %v469 = vmul.f32 %v433, 1.442695
      %v470 = vpow.pop %v469
      %v471 = vmul.f32 %v434, 1.442695
      %v472 = vpow.pop %v471
      %v473 = vmul.f32 %v435, 1.442695
      %v474 = vpow.pop %v473
      %v475 = vmul.f32 %v436, 1.442695
      %v476 = vpow.pop %v475
      %v477 = vmul.f32 %v437, 1.442695
      %v478 = vpow.pop %v477
      %v479 = vmul.f32 %v438, 1.442695
      %v480 = vpow.pop %v479
      %v481 = vmul.f32 %v439, 1.442695
      %v482 = vpow.pop %v481
      %v483 = vmul.f32 %v440, 1.442695
      %v484 = vpow.pop %v483
      %v485 = vmul.f32 %v441, 1.442695
      %v486 = vpow.pop %v485
      %v487 = vmul.f32 %v442, 1.442695
      %v488 = vpow.pop %v487
      %v489 = vmul.f32 %v443, 1.442695
      %v490 = vpow.pop %v489
      %v491 = vmul.f32 %v444, 1.442695
      %v492 = vpow.pop %v491
      %v493 = vmul.f32 %v445, 1.442695
      %v494 = vpow.pop %v493
      %v495 = vmul.f32 %v446, 1.442695
      %v496 = vpow.pop %v495
      %v497 = vmul.f32 %v447, 1.442695
      %v498 = vpow.pop %v497
      %v499 = vmul.f32 %v448, 1.442695
      %v500 = vpow.pop %v499
      %v501 = vmul.f32 %v449, 1.442695
      %v502 = vpow.pop %v501
      %v503 = vmul.f32 %v450, 1.442695
      %v504 = vpow.pop %v503
      %v505 = vmul.f32 %v451, 1.442695
      %v506 = vpow.pop %v505
      %v507 = vmul.f32 %v452, 1.442695
      %v508 = vpow.pop %v507
      %v509 = vmul.f32 %v453, 1.442695
      %v510 = vpow.pop %v509
      %v511 = vmul.f32 %v454, 1.442695
      %v512 = vpow.pop %v511
      %v513 = vmul.f32 %v455, 1.442695
      %v514 = vpow.pop %v513
      %v515 = vmul.f32 %v456, 1.442695
      %v516 = vpow.pop %v515
      %v517 = vmul.f32 %v457, 1.442695
      %v518 = vpow.pop %v517
      %v519 = vmul.f32 %v458, 1.442695
      %v520 = vpow.pop %v519
      %v521 = vmul.f32 %v459, 1.442695
      %v522 = vpow.pop %v521
      %v523 = vmul.f32 %v460, 1.442695
      %v524 = vpow.pop %v523
      %v525 = vadd.f32 %v462, 1.0
      %v526 = vadd.f32 %v464, 1.0
      %v527 = vadd.f32 %v466, 1.0
      %v528 = vadd.f32 %v468, 1.0
      %v529 = vadd.f32 %v470, 1.0
      %v530 = vadd.f32 %v472, 1.0
      %v531 = vadd.f32 %v474, 1.0
      %v532 = vadd.f32 %v476, 1.0
      %v533 = vadd.f32 %v478, 1.0
      %v534 = vadd.f32 %v480, 1.0
      %v535 = vadd.f32 %v482, 1.0
      %v536 = vadd.f32 %v484, 1.0
      %v537 = vadd.f32 %v486, 1.0
      %v538 = vadd.f32 %v488, 1.0
      %v539 = vadd.f32 %v490, 1.0
      %v540 = vadd.f32 %v492, 1.0
      %v541 = vadd.f32 %v494, 1.0
      %v542 = vadd.f32 %v496, 1.0
      %v543 = vadd.f32 %v498, 1.0
      %v544 = vadd.f32 %v500, 1.0
      %v545 = vadd.f32 %v502, 1.0
      %v546 = vadd.f32 %v504, 1.0
      %v547 = vadd.f32 %v506, 1.0
      %v548 = vadd.f32 %v508, 1.0
      %v549 = vadd.f32 %v510, 1.0
      %v550 = vadd.f32 %v512, 1.0
      %v551 = vadd.f32 %v514, 1.0
      %v552 = vadd.f32 %v516, 1.0
      %v553 = vadd.f32 %v518, 1.0
      %v554 = vadd.f32 %v520, 1.0
      %v555 = vadd.f32 %v522, 1.0
      %v556 = vadd.f32 %v524, 1.0
      %v557 = vrcp.pop %v525
      %v558 = vmul.f32 %v525, %v557
      %v559 = vsub.f32 1.0, %v558
      %v560 = vmul.f32 %v557, %v559
      %v561 = vadd.f32 %v557, %v560
      %vm562 = vweird.f32 %v525
      %vm563 = vweird.f32 %v557
      %vm564 = vmor %vm562, %vm563
      %v565 = vsel %vm564, %v557, %v561
      %v566 = vand.u32 2147483647, %v525
      %vm567 = vcmp.eq.f32.partialorder %v566, 8.507059e+37
      %v568 = vand.u32 %v525, 2147483648
      %v569 = vor.u32 1.1754944e-38, %v568
      %v570 = vsel %vm567, %v569, %v565
      %v571 = vmul.f32 1.0, %v570
      %v572 = vrcp.pop %v526
      %v573 = vmul.f32 %v526, %v572
      %v574 = vsub.f32 1.0, %v573
      %v575 = vmul.f32 %v572, %v574
      %v576 = vadd.f32 %v572, %v575
      %vm577 = vweird.f32 %v526
      %vm578 = vweird.f32 %v572
      %vm579 = vmor %vm577, %vm578
      %v580 = vsel %vm579, %v572, %v576
      %v581 = vand.u32 2147483647, %v526
      %vm582 = vcmp.eq.f32.partialorder %v581, 8.507059e+37
      %v583 = vand.u32 %v526, 2147483648
      %v584 = vor.u32 1.1754944e-38, %v583
      %v585 = vsel %vm582, %v584, %v580
      %v586 = vmul.f32 1.0, %v585
      %v587 = vrcp.pop %v527
      %v588 = vmul.f32 %v527, %v587
      %v589 = vsub.f32 1.0, %v588
      %v590 = vmul.f32 %v587, %v589
      %v591 = vadd.f32 %v587, %v590
      %vm592 = vweird.f32 %v527
      %vm593 = vweird.f32 %v587
      %vm594 = vmor %vm592, %vm593
      %v595 = vsel %vm594, %v587, %v591
      %v596 = vand.u32 2147483647, %v527
      %vm597 = vcmp.eq.f32.partialorder %v596, 8.507059e+37
      %v598 = vand.u32 %v527, 2147483648
      %v599 = vor.u32 1.1754944e-38, %v598
      %v600 = vsel %vm597, %v599, %v595
      %v601 = vmul.f32 1.0, %v600
      %v602 = vrcp.pop %v528
      %v603 = vmul.f32 %v528, %v602
      %v604 = vsub.f32 1.0, %v603
      %v605 = vmul.f32 %v602, %v604
      %v606 = vadd.f32 %v602, %v605
      %vm607 = vweird.f32 %v528
      %vm608 = vweird.f32 %v602
      %vm609 = vmor %vm607, %vm608
      %v610 = vsel %vm609, %v602, %v606
      %v611 = vand.u32 2147483647, %v528
      %vm612 = vcmp.eq.f32.partialorder %v611, 8.507059e+37
      %v613 = vand.u32 %v528, 2147483648
      %v614 = vor.u32 1.1754944e-38, %v613
      %v615 = vsel %vm612, %v614, %v610
      %v616 = vmul.f32 1.0, %v615
      %v617 = vrcp.pop %v529
      %v618 = vmul.f32 %v529, %v617
      %v619 = vsub.f32 1.0, %v618
      %v620 = vmul.f32 %v617, %v619
      %v621 = vadd.f32 %v617, %v620
      %vm622 = vweird.f32 %v529
      %vm623 = vweird.f32 %v617
      %vm624 = vmor %vm622, %vm623
      %v625 = vsel %vm624, %v617, %v621
      %v626 = vand.u32 2147483647, %v529
      %vm627 = vcmp.eq.f32.partialorder %v626, 8.507059e+37
      %v628 = vand.u32 %v529, 2147483648
      %v629 = vor.u32 1.1754944e-38, %v628
      %v630 = vsel %vm627, %v629, %v625
      %v631 = vmul.f32 1.0, %v630
      %v632 = vrcp.pop %v530
      %v633 = vmul.f32 %v530, %v632
      %v634 = vsub.f32 1.0, %v633
      %v635 = vmul.f32 %v632, %v634
      %v636 = vadd.f32 %v632, %v635
      %vm637 = vweird.f32 %v530
      %vm638 = vweird.f32 %v632
      %vm639 = vmor %vm637, %vm638
      %v640 = vsel %vm639, %v632, %v636
      %v641 = vand.u32 2147483647, %v530
      %vm642 = vcmp.eq.f32.partialorder %v641, 8.507059e+37
      %v643 = vand.u32 %v530, 2147483648
      %v644 = vor.u32 1.1754944e-38, %v643
      %v645 = vsel %vm642, %v644, %v640
      %v646 = vmul.f32 1.0, %v645
      %v647 = vrcp.pop %v531
      %v648 = vmul.f32 %v531, %v647
      %v649 = vsub.f32 1.0, %v648
      %v650 = vmul.f32 %v647, %v649
      %v651 = vadd.f32 %v647, %v650
      %vm652 = vweird.f32 %v531
      %vm653 = vweird.f32 %v647
      %vm654 = vmor %vm652, %vm653
      %v655 = vsel %vm654, %v647, %v651
      %v656 = vand.u32 2147483647, %v531
      %vm657 = vcmp.eq.f32.partialorder %v656, 8.507059e+37
      %v658 = vand.u32 %v531, 2147483648
      %v659 = vor.u32 1.1754944e-38, %v658
      %v660 = vsel %vm657, %v659, %v655
      %v661 = vmul.f32 1.0, %v660
      %v662 = vrcp.pop %v532
      %v663 = vmul.f32 %v532, %v662
      %v664 = vsub.f32 1.0, %v663
      %v665 = vmul.f32 %v662, %v664
      %v666 = vadd.f32 %v662, %v665
      %vm667 = vweird.f32 %v532
      %vm668 = vweird.f32 %v662
      %vm669 = vmor %vm667, %vm668
      %v670 = vsel %vm669, %v662, %v666
      %v671 = vand.u32 2147483647, %v532
      %vm672 = vcmp.eq.f32.partialorder %v671, 8.507059e+37
      %v673 = vand.u32 %v532, 2147483648
      %v674 = vor.u32 1.1754944e-38, %v673
      %v675 = vsel %vm672, %v674, %v670
      %v676 = vmul.f32 1.0, %v675
      %v677 = vrcp.pop %v533
      %v678 = vmul.f32 %v533, %v677
      %v679 = vsub.f32 1.0, %v678
      %v680 = vmul.f32 %v677, %v679
      %v681 = vadd.f32 %v677, %v680
      %vm682 = vweird.f32 %v533
      %vm683 = vweird.f32 %v677
      %vm684 = vmor %vm682, %vm683
      %v685 = vsel %vm684, %v677, %v681
      %v686 = vand.u32 2147483647, %v533
      %vm687 = vcmp.eq.f32.partialorder %v686, 8.507059e+37
      %v688 = vand.u32 %v533, 2147483648
      %v689 = vor.u32 1.1754944e-38, %v688
      %v690 = vsel %vm687, %v689, %v685
      %v691 = vmul.f32 1.0, %v690
      %v692 = vrcp.pop %v534
      %v693 = vmul.f32 %v534, %v692
      %v694 = vsub.f32 1.0, %v693
      %v695 = vmul.f32 %v692, %v694
      %v696 = vadd.f32 %v692, %v695
      %vm697 = vweird.f32 %v534
      %vm698 = vweird.f32 %v692
      %vm699 = vmor %vm697, %vm698
      %v700 = vsel %vm699, %v692, %v696
      %v701 = vand.u32 2147483647, %v534
      %vm702 = vcmp.eq.f32.partialorder %v701, 8.507059e+37
      %v703 = vand.u32 %v534, 2147483648
      %v704 = vor.u32 1.1754944e-38, %v703
      %v705 = vsel %vm702, %v704, %v700
      %v706 = vmul.f32 1.0, %v705
      %v707 = vrcp.pop %v535
      %v708 = vmul.f32 %v535, %v707
      %v709 = vsub.f32 1.0, %v708
      %v710 = vmul.f32 %v707, %v709
      %v711 = vadd.f32 %v707, %v710
      %vm712 = vweird.f32 %v535
      %vm713 = vweird.f32 %v707
      %vm714 = vmor %vm712, %vm713
      %v715 = vsel %vm714, %v707, %v711
      %v716 = vand.u32 2147483647, %v535
      %vm717 = vcmp.eq.f32.partialorder %v716, 8.507059e+37
      %v718 = vand.u32 %v535, 2147483648
      %v719 = vor.u32 1.1754944e-38, %v718
      %v720 = vsel %vm717, %v719, %v715
      %v721 = vmul.f32 1.0, %v720
      %v722 = vrcp.pop %v536
      %v723 = vmul.f32 %v536, %v722
      %v724 = vsub.f32 1.0, %v723
      %v725 = vmul.f32 %v722, %v724
      %v726 = vadd.f32 %v722, %v725
      %vm727 = vweird.f32 %v536
      %vm728 = vweird.f32 %v722
      %vm729 = vmor %vm727, %vm728
      %v730 = vsel %vm729, %v722, %v726
      %v731 = vand.u32 2147483647, %v536
      %vm732 = vcmp.eq.f32.partialorder %v731, 8.507059e+37
      %v733 = vand.u32 %v536, 2147483648
      %v734 = vor.u32 1.1754944e-38, %v733
      %v735 = vsel %vm732, %v734, %v730
      %v736 = vmul.f32 1.0, %v735
      %v737 = vrcp.pop %v537
      %v738 = vmul.f32 %v537, %v737
      %v739 = vsub.f32 1.0, %v738
      %v740 = vmul.f32 %v737, %v739
      %v741 = vadd.f32 %v737, %v740
      %vm742 = vweird.f32 %v537
      %vm743 = vweird.f32 %v737
      %vm744 = vmor %vm742, %vm743
      %v745 = vsel %vm744, %v737, %v741
      %v746 = vand.u32 2147483647, %v537
      %vm747 = vcmp.eq.f32.partialorder %v746, 8.507059e+37
      %v748 = vand.u32 %v537, 2147483648
      %v749 = vor.u32 1.1754944e-38, %v748
      %v750 = vsel %vm747, %v749, %v745
      %v751 = vmul.f32 1.0, %v750
      %v752 = vrcp.pop %v538
      %v753 = vmul.f32 %v538, %v752
      %v754 = vsub.f32 1.0, %v753
      %v755 = vmul.f32 %v752, %v754
      %v756 = vadd.f32 %v752, %v755
      %vm757 = vweird.f32 %v538
      %vm758 = vweird.f32 %v752
      %vm759 = vmor %vm757, %vm758
      %v760 = vsel %vm759, %v752, %v756
      %v761 = vand.u32 2147483647, %v538
      %vm762 = vcmp.eq.f32.partialorder %v761, 8.507059e+37
      %v763 = vand.u32 %v538, 2147483648
      %v764 = vor.u32 1.1754944e-38, %v763
      %v765 = vsel %vm762, %v764, %v760
      %v766 = vmul.f32 1.0, %v765
      %v767 = vrcp.pop %v539
      %v768 = vmul.f32 %v539, %v767
      %v769 = vsub.f32 1.0, %v768
      %v770 = vmul.f32 %v767, %v769
      %v771 = vadd.f32 %v767, %v770
      %vm772 = vweird.f32 %v539
      %vm773 = vweird.f32 %v767
      %vm774 = vmor %vm772, %vm773
      %v775 = vsel %vm774, %v767, %v771
      %v776 = vand.u32 2147483647, %v539
      %vm777 = vcmp.eq.f32.partialorder %v776, 8.507059e+37
      %v778 = vand.u32 %v539, 2147483648
      %v779 = vor.u32 1.1754944e-38, %v778
      %v780 = vsel %vm777, %v779, %v775
      %v781 = vmul.f32 1.0, %v780
      %v782 = vrcp.pop %v540
      %v783 = vmul.f32 %v540, %v782
      %v784 = vsub.f32 1.0, %v783
      %v785 = vmul.f32 %v782, %v784
      %v786 = vadd.f32 %v782, %v785
      %vm787 = vweird.f32 %v540
      %vm788 = vweird.f32 %v782
      %vm789 = vmor %vm787, %vm788
      %v790 = vsel %vm789, %v782, %v786
      %v791 = vand.u32 2147483647, %v540
      %vm792 = vcmp.eq.f32.partialorder %v791, 8.507059e+37
      %v793 = vand.u32 %v540, 2147483648
      %v794 = vor.u32 1.1754944e-38, %v793
      %v795 = vsel %vm792, %v794, %v790
      %v796 = vmul.f32 1.0, %v795
      %v797 = vrcp.pop %v541
      %v798 = vmul.f32 %v541, %v797
      %v799 = vsub.f32 1.0, %v798
      %v800 = vmul.f32 %v797, %v799
      %v801 = vadd.f32 %v797, %v800
      %vm802 = vweird.f32 %v541
      %vm803 = vweird.f32 %v797
      %vm804 = vmor %vm802, %vm803
      %v805 = vsel %vm804, %v797, %v801
      %v806 = vand.u32 2147483647, %v541
      %vm807 = vcmp.eq.f32.partialorder %v806, 8.507059e+37
      %v808 = vand.u32 %v541, 2147483648
      %v809 = vor.u32 1.1754944e-38, %v808
      %v810 = vsel %vm807, %v809, %v805
      %v811 = vmul.f32 1.0, %v810
      %v812 = vrcp.pop %v542
      %v813 = vmul.f32 %v542, %v812
      %v814 = vsub.f32 1.0, %v813
      %v815 = vmul.f32 %v812, %v814
      %v816 = vadd.f32 %v812, %v815
      %vm817 = vweird.f32 %v542
      %vm818 = vweird.f32 %v812
      %vm819 = vmor %vm817, %vm818
      %v820 = vsel %vm819, %v812, %v816
      %v821 = vand.u32 2147483647, %v542
      %vm822 = vcmp.eq.f32.partialorder %v821, 8.507059e+37
      %v823 = vand.u32 %v542, 2147483648
      %v824 = vor.u32 1.1754944e-38, %v823
      %v825 = vsel %vm822, %v824, %v820
      %v826 = vmul.f32 1.0, %v825
      %v827 = vrcp.pop %v543
      %v828 = vmul.f32 %v543, %v827
      %v829 = vsub.f32 1.0, %v828
      %v830 = vmul.f32 %v827, %v829
      %v831 = vadd.f32 %v827, %v830
      %vm832 = vweird.f32 %v543
      %vm833 = vweird.f32 %v827
      %vm834 = vmor %vm832, %vm833
      %v835 = vsel %vm834, %v827, %v831
      %v836 = vand.u32 2147483647, %v543
      %vm837 = vcmp.eq.f32.partialorder %v836, 8.507059e+37
      %v838 = vand.u32 %v543, 2147483648
      %v839 = vor.u32 1.1754944e-38, %v838
      %v840 = vsel %vm837, %v839, %v835
      %v841 = vmul.f32 1.0, %v840
      %v842 = vrcp.pop %v544
      %v843 = vmul.f32 %v544, %v842
      %v844 = vsub.f32 1.0, %v843
      %v845 = vmul.f32 %v842, %v844
      %v846 = vadd.f32 %v842, %v845
      %vm847 = vweird.f32 %v544
      %vm848 = vweird.f32 %v842
      %vm849 = vmor %vm847, %vm848
      %v850 = vsel %vm849, %v842, %v846
      %v851 = vand.u32 2147483647, %v544
      %vm852 = vcmp.eq.f32.partialorder %v851, 8.507059e+37
      %v853 = vand.u32 %v544, 2147483648
      %v854 = vor.u32 1.1754944e-38, %v853
      %v855 = vsel %vm852, %v854, %v850
      %v856 = vmul.f32 1.0, %v855
      %v857 = vrcp.pop %v545
      %v858 = vmul.f32 %v545, %v857
      %v859 = vsub.f32 1.0, %v858
      %v860 = vmul.f32 %v857, %v859
      %v861 = vadd.f32 %v857, %v860
      %vm862 = vweird.f32 %v545
      %vm863 = vweird.f32 %v857
      %vm864 = vmor %vm862, %vm863
      %v865 = vsel %vm864, %v857, %v861
      %v866 = vand.u32 2147483647, %v545
      %vm867 = vcmp.eq.f32.partialorder %v866, 8.507059e+37
      %v868 = vand.u32 %v545, 2147483648
      %v869 = vor.u32 1.1754944e-38, %v868
      %v870 = vsel %vm867, %v869, %v865
      %v871 = vmul.f32 1.0, %v870
      %v872 = vrcp.pop %v546
      %v873 = vmul.f32 %v546, %v872
      %v874 = vsub.f32 1.0, %v873
      %v875 = vmul.f32 %v872, %v874
      %v876 = vadd.f32 %v872, %v875
      %vm877 = vweird.f32 %v546
      %vm878 = vweird.f32 %v872
      %vm879 = vmor %vm877, %vm878
      %v880 = vsel %vm879, %v872, %v876
      %v881 = vand.u32 2147483647, %v546
      %vm882 = vcmp.eq.f32.partialorder %v881, 8.507059e+37
      %v883 = vand.u32 %v546, 2147483648
      %v884 = vor.u32 1.1754944e-38, %v883
      %v885 = vsel %vm882, %v884, %v880
      %v886 = vmul.f32 1.0, %v885
      %v887 = vrcp.pop %v547
      %v888 = vmul.f32 %v547, %v887
      %v889 = vsub.f32 1.0, %v888
      %v890 = vmul.f32 %v887, %v889
      %v891 = vadd.f32 %v887, %v890
      %vm892 = vweird.f32 %v547
      %vm893 = vweird.f32 %v887
      %vm894 = vmor %vm892, %vm893
      %v895 = vsel %vm894, %v887, %v891
      %v896 = vand.u32 2147483647, %v547
      %vm897 = vcmp.eq.f32.partialorder %v896, 8.507059e+37
      %v898 = vand.u32 %v547, 2147483648
      %v899 = vor.u32 1.1754944e-38, %v898
      %v900 = vsel %vm897, %v899, %v895
      %v901 = vmul.f32 1.0, %v900
      %v902 = vrcp.pop %v548
      %v903 = vmul.f32 %v548, %v902
      %v904 = vsub.f32 1.0, %v903
      %v905 = vmul.f32 %v902, %v904
      %v906 = vadd.f32 %v902, %v905
      %vm907 = vweird.f32 %v548
      %vm908 = vweird.f32 %v902
      %vm909 = vmor %vm907, %vm908
      %v910 = vsel %vm909, %v902, %v906
      %v911 = vand.u32 2147483647, %v548
      %vm912 = vcmp.eq.f32.partialorder %v911, 8.507059e+37
      %v913 = vand.u32 %v548, 2147483648
      %v914 = vor.u32 1.1754944e-38, %v913
      %v915 = vsel %vm912, %v914, %v910
      %v916 = vmul.f32 1.0, %v915
      %v917 = vrcp.pop %v549
      %v918 = vmul.f32 %v549, %v917
      %v919 = vsub.f32 1.0, %v918
      %v920 = vmul.f32 %v917, %v919
      %v921 = vadd.f32 %v917, %v920
      %vm922 = vweird.f32 %v549
      %vm923 = vweird.f32 %v917
      %vm924 = vmor %vm922, %vm923
      %v925 = vsel %vm924, %v917, %v921
      %v926 = vand.u32 2147483647, %v549
      %vm927 = vcmp.eq.f32.partialorder %v926, 8.507059e+37
      %v928 = vand.u32 %v549, 2147483648
      %v929 = vor.u32 1.1754944e-38, %v928
      %v930 = vsel %vm927, %v929, %v925
      %v931 = vmul.f32 1.0, %v930
      %v932 = vrcp.pop %v550
      %v933 = vmul.f32 %v550, %v932
      %v934 = vsub.f32 1.0, %v933
      %v935 = vmul.f32 %v932, %v934
      %v936 = vadd.f32 %v932, %v935
      %vm937 = vweird.f32 %v550
      %vm938 = vweird.f32 %v932
      %vm939 = vmor %vm937, %vm938
      %v940 = vsel %vm939, %v932, %v936
      %v941 = vand.u32 2147483647, %v550
      %vm942 = vcmp.eq.f32.partialorder %v941, 8.507059e+37
      %v943 = vand.u32 %v550, 2147483648
      %v944 = vor.u32 1.1754944e-38, %v943
      %v945 = vsel %vm942, %v944, %v940
      %v946 = vmul.f32 1.0, %v945
      %v947 = vrcp.pop %v551
      %v948 = vmul.f32 %v551, %v947
      %v949 = vsub.f32 1.0, %v948
      %v950 = vmul.f32 %v947, %v949
      %v951 = vadd.f32 %v947, %v950
      %vm952 = vweird.f32 %v551
      %vm953 = vweird.f32 %v947
      %vm954 = vmor %vm952, %vm953
      %v955 = vsel %vm954, %v947, %v951
      %v956 = vand.u32 2147483647, %v551
      %vm957 = vcmp.eq.f32.partialorder %v956, 8.507059e+37
      %v958 = vand.u32 %v551, 2147483648
      %v959 = vor.u32 1.1754944e-38, %v958
      %v960 = vsel %vm957, %v959, %v955
      %v961 = vmul.f32 1.0, %v960
      %v962 = vrcp.pop %v552
      %v963 = vmul.f32 %v552, %v962
      %v964 = vsub.f32 1.0, %v963
      %v965 = vmul.f32 %v962, %v964
      %v966 = vadd.f32 %v962, %v965
      %vm967 = vweird.f32 %v552
      %vm968 = vweird.f32 %v962
      %vm969 = vmor %vm967, %vm968
      %v970 = vsel %vm969, %v962, %v966
      %v971 = vand.u32 2147483647, %v552
      %vm972 = vcmp.eq.f32.partialorder %v971, 8.507059e+37
      %v973 = vand.u32 %v552, 2147483648
      %v974 = vor.u32 1.1754944e-38, %v973
      %v975 = vsel %vm972, %v974, %v970
      %v976 = vmul.f32 1.0, %v975
      %v977 = vrcp.pop %v553
      %v978 = vmul.f32 %v553, %v977
      %v979 = vsub.f32 1.0, %v978
      %v980 = vmul.f32 %v977, %v979
      %v981 = vadd.f32 %v977, %v980
      %vm982 = vweird.f32 %v553
      %vm983 = vweird.f32 %v977
      %vm984 = vmor %vm982, %vm983
      %v985 = vsel %vm984, %v977, %v981
      %v986 = vand.u32 2147483647, %v553
      %vm987 = vcmp.eq.f32.partialorder %v986, 8.507059e+37
      %v988 = vand.u32 %v553, 2147483648
      %v989 = vor.u32 1.1754944e-38, %v988
      %v990 = vsel %vm987, %v989, %v985
      %v991 = vmul.f32 1.0, %v990
      %v992 = vrcp.pop %v554
      %v993 = vmul.f32 %v554, %v992
      %v994 = vsub.f32 1.0, %v993
      %v995 = vmul.f32 %v992, %v994
      %v996 = vadd.f32 %v992, %v995
      %vm997 = vweird.f32 %v554
      %vm998 = vweird.f32 %v992
      %vm999 = vmor %vm997, %vm998
      %v1000 = vsel %vm999, %v992, %v996
      %v1001 = vand.u32 2147483647, %v554
      %vm1002 = vcmp.eq.f32.partialorder %v1001, 8.507059e+37
      %v1003 = vand.u32 %v554, 2147483648
      %v1004 = vor.u32 1.1754944e-38, %v1003
      %v1005 = vsel %vm1002, %v1004, %v1000
      %v1006 = vmul.f32 1.0, %v1005
      %v1007 = vrcp.pop %v555
      %v1008 = vmul.f32 %v555, %v1007
      %v1009 = vsub.f32 1.0, %v1008
      %v1010 = vmul.f32 %v1007, %v1009
      %v1011 = vadd.f32 %v1007, %v1010
      %vm1012 = vweird.f32 %v555
      %vm1013 = vweird.f32 %v1007
      %vm1014 = vmor %vm1012, %vm1013
      %v1015 = vsel %vm1014, %v1007, %v1011
      %v1016 = vand.u32 2147483647, %v555
      %vm1017 = vcmp.eq.f32.partialorder %v1016, 8.507059e+37
      %v1018 = vand.u32 %v555, 2147483648
      %v1019 = vor.u32 1.1754944e-38, %v1018
      %v1020 = vsel %vm1017, %v1019, %v1015
      %v1021 = vmul.f32 1.0, %v1020
      %v1022 = vrcp.pop %v556
      %v1023 = vmul.f32 %v556, %v1022
      %v1024 = vsub.f32 1.0, %v1023
      %v1025 = vmul.f32 %v1022, %v1024
      %v1026 = vadd.f32 %v1022, %v1025
      %vm1027 = vweird.f32 %v556
      %vm1028 = vweird.f32 %v1022
      %vm1029 = vmor %vm1027, %vm1028
      %v1030 = vsel %vm1029, %v1022, %v1026
      %v1031 = vand.u32 2147483647, %v556
      %vm1032 = vcmp.eq.f32.partialorder %v1031, 8.507059e+37
      %v1033 = vand.u32 %v556, 2147483648
      %v1034 = vor.u32 1.1754944e-38, %v1033
      %v1035 = vsel %vm1032, %v1034, %v1030
      %v1036 = vmul.f32 1.0, %v1035
      %v1037 = vmul.f32 %v334, %v571
      %v1038 = vmul.f32 %v337, %v586
      %v1039 = vmul.f32 %v340, %v601
      %v1040 = vmul.f32 %v343, %v616
      %v1041 = vmul.f32 %v346, %v631
      %v1042 = vmul.f32 %v349, %v646
      %v1043 = vmul.f32 %v352, %v661
      %v1044 = vmul.f32 %v355, %v676
      %v1045 = vmul.f32 %v358, %v691
      %v1046 = vmul.f32 %v361, %v706
      %v1047 = vmul.f32 %v364, %v721
      %v1048 = vmul.f32 %v367, %v736
      %v1049 = vmul.f32 %v370, %v751
      %v1050 = vmul.f32 %v373, %v766
      %v1051 = vmul.f32 %v376, %v781
      %v1052 = vmul.f32 %v379, %v796
      %v1053 = vmul.f32 %v382, %v811
      %v1054 = vmul.f32 %v385, %v826
      %v1055 = vmul.f32 %v388, %v841
      %v1056 = vmul.f32 %v391, %v856
      %v1057 = vmul.f32 %v394, %v871
      %v1058 = vmul.f32 %v397, %v886
      %v1059 = vmul.f32 %v400, %v901
      %v1060 = vmul.f32 %v403, %v916
      %v1061 = vmul.f32 %v406, %v931
      %v1062 = vmul.f32 %v409, %v946
      %v1063 = vmul.f32 %v412, %v961
      %v1064 = vmul.f32 %v415, %v976
      %v1065 = vmul.f32 %v418, %v991
      %v1066 = vmul.f32 %v421, %v1006
      %v1067 = vmul.f32 %v424, %v1021
      %v1068 = vmul.f32 %v427, %v1036
      %vm1069 = vcmask 64512
      %1070 = vst.msk [vmem:[%s172] sm:$0xff] %vm1069, %v1037
      %1071 = vst.msk [vmem:[%s172 + $0x8] sm:$0xff] %vm1069, %v1038
      %1072 = vst.msk [vmem:[%s172 + $0x10] sm:$0xff] %vm1069, %v1039
      %1073 = vst.msk [vmem:[%s172 + $0x18] sm:$0xff] %vm1069, %v1040
      %1074 = vst.msk [vmem:[%s172 + $0x20] sm:$0xff] %vm1069, %v1041
      %1075 = vst.msk [vmem:[%s172 + $0x28] sm:$0xff] %vm1069, %v1042
      %1076 = vst.msk [vmem:[%s172 + $0x30] sm:$0xff] %vm1069, %v1043
      %1077 = vst.msk [vmem:[%s172 + $0x38] sm:$0xff] %vm1069, %v1044
      %1078 = vst.msk [vmem:[%s172 + $0x40] sm:$0xff] %vm1069, %v1045
      %1079 = vst.msk [vmem:[%s172 + $0x48] sm:$0xff] %vm1069, %v1046
      %1080 = vst.msk [vmem:[%s172 + $0x50] sm:$0xff] %vm1069, %v1047
      %1081 = vst.msk [vmem:[%s172 + $0x58] sm:$0xff] %vm1069, %v1048
      %1082 = vst.msk [vmem:[%s172 + $0x60] sm:$0xff] %vm1069, %v1049
      %1083 = vst.msk [vmem:[%s172 + $0x68] sm:$0xff] %vm1069, %v1050
      %1084 = vst.msk [vmem:[%s172 + $0x70] sm:$0xff] %vm1069, %v1051
      %1085 = vst.msk [vmem:[%s172 + $0x78] sm:$0xff] %vm1069, %v1052
      %1086 = vst.msk [vmem:[%s172 + $0x80] sm:$0xff] %vm1069, %v1053
      %1087 = vst.msk [vmem:[%s172 + $0x88] sm:$0xff] %vm1069, %v1054
      %1088 = vst.msk [vmem:[%s172 + $0x90] sm:$0xff] %vm1069, %v1055
      %1089 = vst.msk [vmem:[%s172 + $0x98] sm:$0xff] %vm1069, %v1056
      %1090 = vst.msk [vmem:[%s172 + $0xa0] sm:$0xff] %vm1069, %v1057
      %1091 = vst.msk [vmem:[%s172 + $0xa8] sm:$0xff] %vm1069, %v1058
      %1092 = vst.msk [vmem:[%s172 + $0xb0] sm:$0xff] %vm1069, %v1059
      %1093 = vst.msk [vmem:[%s172 + $0xb8] sm:$0xff] %vm1069, %v1060
      %1094 = vst.msk [vmem:[%s172 + $0xc0] sm:$0xff] %vm1069, %v1061
      %1095 = vst.msk [vmem:[%s172 + $0xc8] sm:$0xff] %vm1069, %v1062
      %1096 = vst.msk [vmem:[%s172 + $0xd0] sm:$0xff] %vm1069, %v1063
      %1097 = vst.msk [vmem:[%s172 + $0xd8] sm:$0xff] %vm1069, %v1064
      %1098 = vst.msk [vmem:[%s172 + $0xe0] sm:$0xff] %vm1069, %v1065
      %1099 = vst.msk [vmem:[%s172 + $0xe8] sm:$0xff] %vm1069, %v1066
      %1100 = vst.msk [vmem:[%s172 + $0xf0] sm:$0xff] %vm1069, %v1067
      %1101 = vst.msk [vmem:[%s172 + $0xf8] sm:$0xff] %vm1069, %v1068
      %s1102 = smul.u32 32, %s14
      %p1103 = scmp.lt.s32.totalorder %s1102, 63
      %s1104 = scalar_select %p1103, %s1102, 63
      %s1105 = smul.addr %s1104, 8
      %s1106 = scalar_lea.vmem %s3, %s1105
      // Predicated region
      $region33: #{tpu_custom_call.1} parent=31 // pred_check
        %p1107 = pneg %p100
      $region34: #{tpu_custom_call.1} parent=31 // pred_check_branch
        %1109 = sbr.rel (%p1107) target = $region36
      $region35: #{tpu_custom_call.1} parent=31 // pred_region
        %s1110 = smul.u32 32, %s14
      $region36: #{tpu_custom_call.1} parent=31 // pred_fallthru
        _
    $region32: #{tpu_custom_call.1} parent=5 // pred_fallthru
      _
    %p1111 = scmp.le.s32.totalorder 2, %s9
    // Predicated region
    $region37: #{tpu_custom_call.1} parent=5 // pred_check
      %p1112 = pneg %p1111
    $region38: #{tpu_custom_call.1} parent=5 // pred_check_branch
      %1114 = sbr.rel (%p1112) target = $region40
    $region39: #{tpu_custom_call.1} parent=5 // pred_region
      %s1115 = ssub.s32 %s9, 2
      // Predicated region
      $region41: #{tpu_custom_call.1} parent=39 // pred_check
        %p1116 = pneg %p106
      $region42: #{tpu_custom_call.1} parent=39 // pred_check_branch
        %1118 = sbr.rel (%p1116) target = $region44
      $region43: #{tpu_custom_call.1} parent=39 // pred_region
        %s1119 = smul.u32 32, %s15
        %p1120 = scmp.lt.s32.totalorder %s1119, 63
        %s1121 = scalar_select %p1120, %s1119, 63
        %s1122 = smul.addr %s1121, 8
        %s1123 = scalar_lea.vmem %s3, %s1122
      $region44: #{tpu_custom_call.1} parent=39 // pred_fallthru
        _
    $region40: #{tpu_custom_call.1} parent=5 // pred_fallthru
      _
  $region6: #{tpu_custom_call.1} parent=0 // loop_footer
    %s13 = sadd.s32 1, %s9
  $region7: #{tpu_custom_call.1} parent=0 // loop_footer_branch
    %8 = sbr.rel target = $region3
  $region8: #{tpu_custom_call.1} parent=0 // loop_exit
    _

</llo_original>
